<compile_context>
chip_gen: v6e
topology: v6e:2x2x1
jax: 0.10.0
libtpu: 0.0.40
codegen_flags: <defaults>
</compile_context>

<pallas_src>
import functools

import jax
import jax.numpy as jnp
from jax.experimental import pallas as pl
from jax.experimental.pallas import tpu as pltpu


def _round_up(x: int, m: int) -> int:
    return (x + m - 1) // m * m


# --------------------------------------------------------------------------- #
# Kernel body: plain biased matmul (standardization already folded into W'/b').
# --------------------------------------------------------------------------- #
def _biased_matmul_kernel(x_ref, w_ref, b_ref, o_ref):
    x = x_ref[...]
    w = w_ref[...]
    if x.dtype != w.dtype:
        # Per-tile cast of the (small) x block only; W' was cast once in the
        # wrapper, so the resident weight tile is never re-cast per grid step.
        x = x.astype(w.dtype)
    y = jnp.dot(x, w, preferred_element_type=jnp.float32)  # MXU, f32 accumulate
    o_ref[...] = (y + b_ref[...]).astype(o_ref.dtype)      # b' is f32 already


# --------------------------------------------------------------------------- #
# One-time parameter fold (call once; reuse across forward calls).
# --------------------------------------------------------------------------- #
def fold_standardize_params(w, b, ds_stats, *, weights_dtype=None):
    """Fold Standardize's pre/post normalization into Linear weights/bias."""
    stats = [float(s) for s in ds_stats]
    if len(stats) == 2:
        muin, stdin = stats
        muout, stdout = 0.0, 1.0
    elif len(stats) == 4:
        muin, stdin, muout, stdout = stats
    else:
        raise ValueError("ds_stats must be a list of length 2 or 4")
    if stdin == 0.0:
        raise ValueError("stdin must be nonzero")

    w32 = jnp.asarray(w, jnp.float32)
    b32 = jnp.asarray(b, jnp.float32).reshape(1, -1)
    w_fold = (stdout / stdin) * w32
    b_fold = (
        stdout * b32
        + muout
        - (stdout * muin / stdin) * jnp.sum(w32, axis=0, keepdims=True)
    )
    if weights_dtype is not None and jnp.dtype(weights_dtype) != jnp.float32:
        # Scale is baked in before rounding (fine for bf16 unless stdout/stdin
        # is extreme); bias stays f32 and is added to the f32 accumulator.
        w_fold = w_fold.astype(weights_dtype)
    return w_fold, b_fold


# --------------------------------------------------------------------------- #
# Hot path: batch-tiled biased matmul with resident weights.
# --------------------------------------------------------------------------- #
def standardized_linear(x, w_fold, b_fold, *, tm=512, tn=None):
    B, Din = x.shape
    Din_w, Dout = w_fold.shape
    assert Din == Din_w, "weight/input inner-dim mismatch"
    assert b_fold.shape == (1, Dout), "bias must be (1, Dout)"

    x_bytes = jnp.dtype(x.dtype).itemsize
    w_bytes = jnp.dtype(w_fold.dtype).itemsize
    out_dtype = x.dtype
    o_bytes = jnp.dtype(out_dtype).itemsize

    # ---- Batch (M) tile: large for HBM roofline; guarantee >= 2 tiles so the
    #      parallel grid axis spans both TensorCores on v7x. ----
    mult = 16 if x_bytes == 2 else 8          # bf16 sublane packing wants x16
    if B <= mult:
        TM = B                                # single tiny block (== full dim)
    else:
        TM = min(_round_up(tm, mult), _round_up(pl.cdiv(B, 2), mult))
    grid_m = pl.cdiv(B, TM)

    # ---- Output (N) tile: only tile when the weight slab is large; never pad
    #      Dout + slice afterwards (that costs an output-sized HBM round trip).
    if tn is not None:
        TN = tn
    else:
        TN = Dout
        if Dout % 128 == 0 and Din * Dout * w_bytes > (8 << 20):
            for cand in (1024, 512, 256):     # multiples of 256 feed v6e/v7x MXU
                if Dout % cand == 0:
                    TN = cand
                    break
    grid_n = pl.cdiv(Dout, TN)

    # ---- Explicit VMEM budget: x/out double-buffered, W'/b' single-buffered.
    working = (
        2 * TM * Din * x_bytes
        + 2 * TM * TN * o_bytes
        + Din * TN * w_bytes
        + 8 * max(TN, 128) * 4
    )
    vmem_limit = int(min(max(2 * working + (1 << 20), 4 << 20), 100 << 20))

    cost = pl.CostEstimate(
        flops=2 * B * Din * Dout,
        transcendentals=0,
        bytes_accessed=(
            grid_n * B * Din * x_bytes        # x (re-streamed per N tile)
            + Din * Dout * w_bytes            # W' read once
            + Dout * 4                        # b'
            + B * Dout * o_bytes              # output
        ),
    )

    if grid_n == 1:
        # Common case: 1-D batch grid, weights fully resident (single buffer).
        grid = (grid_m,)
        in_specs = [
            pl.BlockSpec((TM, Din), lambda i: (i, 0)),
            pl.BlockSpec((Din, TN), lambda i: (0, 0), pipeline_mode=pl.Buffered(1)),
            pl.BlockSpec((1, TN), lambda i: (0, 0), pipeline_mode=pl.Buffered(1)),
        ]
        out_specs = pl.BlockSpec((TM, TN), lambda i: (i, 0))
        dims = ("parallel",)
    else:
        # N outer / M inner: the W' tile stays resident across the batch sweep.
        grid = (grid_n, grid_m)
        in_specs = [
            pl.BlockSpec((TM, Din), lambda j, i: (i, 0)),
            pl.BlockSpec((Din, TN), lambda j, i: (0, j), pipeline_mode=pl.Buffered(1)),
            pl.BlockSpec((1, TN), lambda j, i: (0, j), pipeline_mode=pl.Buffered(1)),
        ]
        out_specs = pl.BlockSpec((TM, TN), lambda j, i: (i, j))
        dims = ("parallel", "parallel")

    return pl.pallas_call(
        _biased_matmul_kernel,
        out_shape=jax.ShapeDtypeStruct((B, Dout), out_dtype),
        grid=grid,
        in_specs=in_specs,
        out_specs=out_specs,
        compiler_params=pltpu.CompilerParams(
            dimension_semantics=dims,
            vmem_limit_bytes=vmem_limit,
        ),
        cost_estimate=cost,
    )(x, w_fold, b_fold)


# --------------------------------------------------------------------------- #
# Factory: fold once, return a jitted forward (Standardize(Linear).forward).
# --------------------------------------------------------------------------- #
def make_standardize(w, b, ds_stats, *, weights_dtype=None, tm=512, tn=None):
    w_fold, b_fold = fold_standardize_params(w, b, ds_stats, weights_dtype=weights_dtype)
    w_fold = jax.block_until_ready(w_fold)
    b_fold = jax.block_until_ready(b_fold)

    @jax.jit
    def apply(x):
        return standardized_linear(x, w_fold, b_fold, tm=tm, tn=tn)

    return apply


if __name__ == "__main__":
    key = jax.random.PRNGKey(0)
    kx, kw, kb = jax.random.split(key, 3)

    # Small shapes consistent with a Linear-wrapped Standardize module.
    B, Din, Dout = 64, 32, 32
    x = jax.random.normal(kx, (B, Din), dtype=jnp.float32) * 3.0 + 1.5
    w = jax.random.normal(kw, (Din, Dout), dtype=jnp.float32) * 0.1
    b = jax.random.normal(kb, (1, Dout), dtype=jnp.float32) * 0.01

    # 4-stat variant: [muin, stdin, muout, stdout].
    ds4 = [1.5, 3.0, -0.25, 2.0]
    muin, stdin, muout, stdout = ds4
    ref4 = stdout * (((x - muin) / stdin) @ w + b) + muout

    fwd4 = make_standardize(w, b, ds4)
    out4 = jax.block_until_ready(fwd4(x))
    assert out4.shape == (B, Dout)
    assert jnp.allclose(out4, ref4, atol=1e-4, rtol=1e-4), "mismatch (4-stat)"

    # Explicit small tile to exercise the multi-step batch-tiled grid path.
    wf, bf = fold_standardize_params(w, b, ds4)
    out_tiled = jax.block_until_ready(standardized_linear(x, wf, bf, tm=16))
    assert jnp.allclose(out_tiled, ref4, atol=1e-4, rtol=1e-4), "mismatch (tiled grid)"

    # 2-stat variant: output un-normalization is the identity.
    fwd2 = make_standardize(w, b, [1.5, 3.0])
    ref2 = ((x - 1.5) / 3.0) @ w + b
    out2 = jax.block_until_ready(fwd2(x))
    assert jnp.allclose(out2, ref2, atol=1e-4, rtol=1e-4), "mismatch (2-stat)"

    # bf16 weights cast once in the wrapper (f32 accumulation in the kernel).
    fwd_bf16 = make_standardize(w, b, ds4, weights_dtype=jnp.bfloat16)
    out_bf16 = jax.block_until_ready(fwd_bf16(x))
    assert jnp.allclose(out_bf16, ref4, atol=1e-1, rtol=1e-1), "mismatch (bf16 weights)"

    print("KERNEL_OK")
</pallas_src>

<mosaic_0001>
module attributes {stable_mosaic.version = 11 : i64} {
  func.func @_biased_matmul_kernel(%arg0: i32, %arg1: memref<32x32xf32, #tpu.memory_space<vmem>>, %arg2: memref<32x32xf32, #tpu.memory_space<vmem>>, %arg3: memref<1x32xf32, #tpu.memory_space<vmem>>, %arg4: memref<32x32xf32, #tpu.memory_space<vmem>>) attributes {dimension_semantics = [#tpu.dimension_semantics<parallel>], iteration_bounds = array<i64: 2>, scalar_prefetch = 0 : i64, scratch_operands = 0 : i64, tpu.core_type = #tpu.core_type<tc>, window_params = [{transform_indices = @transform_0, window_bounds = array<i64: 32, 32>}, {pipeline_mode = #tpu.pipeline_mode<synchronous>, transform_indices = @transform_1, window_bounds = array<i64: 32, 32>}, {pipeline_mode = #tpu.pipeline_mode<synchronous>, transform_indices = @transform_2, window_bounds = array<i64: 1, 32>}, {transform_indices = @transform_3, window_bounds = array<i64: 32, 32>}]} {
    %c0 = arith.constant 0 : index
    %c0_0 = arith.constant 0 : index
    %0 = vector.load %arg1[%c0, %c0_0] : memref<32x32xf32, #tpu.memory_space<vmem>>, vector<32x32xf32>
    %c0_1 = arith.constant 0 : index
    %c0_2 = arith.constant 0 : index
    %1 = vector.load %arg2[%c0_1, %c0_2] : memref<32x32xf32, #tpu.memory_space<vmem>>, vector<32x32xf32>
    %cst = arith.constant dense<0.000000e+00> : vector<32x32xf32>
    %2 = tpu.matmul %0, %1, %cst {dimension_numbers = #tpu.dot_dimension_numbers<[1], [0], [0], [1], [0, 0, 1, 1], [], []>} : vector<32x32xf32>, vector<32x32xf32>, vector<32x32xf32> -> vector<32x32xf32>
    %c0_3 = arith.constant 0 : index
    %c0_4 = arith.constant 0 : index
    %3 = vector.load %arg3[%c0_3, %c0_4] : memref<1x32xf32, #tpu.memory_space<vmem>>, vector<1x32xf32>
    %4 = vector.broadcast %3 : vector<1x32xf32> to vector<32x32xf32>
    %5 = arith.addf %2, %4 : vector<32x32xf32>
    %c0_5 = arith.constant 0 : index
    %c0_6 = arith.constant 0 : index
    %6 = vector.load %arg4[%c0_5, %c0_6] : memref<32x32xf32, #tpu.memory_space<vmem>>, vector<32x32xf32>
    tpu.vector_store %arg4[%c0_5, %c0_6], %5 {strides = array<i32>} : memref<32x32xf32, #tpu.memory_space<vmem>>, vector<32x32xf32>,
    return
  }
  func.func @transform_0(%arg0: i32) -> (i32, i32) {
    %c0_i32 = arith.constant 0 : i32
    %c0_i32_0 = arith.constant 0 : i32
    return %arg0, %c0_i32 : i32, i32
  }
  func.func @transform_1(%arg0: i32) -> (i32, i32) {
    %c0_i32 = arith.constant 0 : i32
    %c0_i32_0 = arith.constant 0 : i32
    %c0_i32_1 = arith.constant 0 : i32
    return %c0_i32, %c0_i32_0 : i32, i32
  }
  func.func @transform_2(%arg0: i32) -> (i32, i32) {
    %c0_i32 = arith.constant 0 : i32
    %c0_i32_0 = arith.constant 0 : i32
    %c0_i32_1 = arith.constant 0 : i32
    return %c0_i32, %c0_i32_0 : i32, i32
  }
  func.func @transform_3(%arg0: i32) -> (i32, i32) {
    %c0_i32 = arith.constant 0 : i32
    %c0_i32_0 = arith.constant 0 : i32
    return %arg0, %c0_i32 : i32, i32
  }
}

</mosaic_0001>

<llo_original>
// kernel: apply.1
$region0: #{apply.1}
  #allocation0 [shape = 'u32[]', space=smem, size = 0x4, offset = 0x4, fixed_abs, tag = 'smem constant byte address 0x4 - core index']
  #allocation1 [shape = 'u32[144,128]{1,0:T(1,128)}', space=vmem, size = 0x12000, scoped, tag = 'internal scratch']
  %s0 = inlined_call_operand.vmem [shape: f32[64,32], index: 0, kind: input, shape index: {}]
  %s1 = inlined_call_operand.vmem [shape: f32[32,32], index: 1, kind: input, shape index: {}]
  %s2 = inlined_call_operand.vmem [shape: f32[1,32], index: 2, kind: input, shape index: {}]
  %s3 = inlined_call_operand.vmem [shape: f32[64,32], index: 3, kind: output, shape index: {}]
  %s4 = sld [smem:[#allocation0]]
  $region45: #{apply.1} parent=0
    _
  %s6 = ssub.s32 1, %s4
  %s7 = scalar_select 0, %s6, %s4
  loop: start=0, step=1, limit=4
  $region2: #{apply.1} parent=0 // loop_pre_header
    _
  $region3: #{apply.1} parent=0 // loop_header
    %s9 = sphi 0, %s13
    %p10 = scmp.ge.s32.totalorder %s9, 4
    %s19 = sphi 0, %s21
    %s22 = sphi 0, %s19
    %s23 = sphi 0, %s22
    %s39 = sphi 0, %s23
    %s43 = sphi 0, %s43
    %s45 = sphi 0, %s43
    %s46 = sphi 0, %s45
    %s60 = sphi 0, %s46
    %s64 = sphi 0, %s64
    %s66 = sphi 0, %s64
    %s67 = sphi 0, %s66
    %s81 = sphi 0, %s67
    %s87 = sphi 0, %s89
    %s90 = sphi 0, %s87
    %s91 = sphi 0, %s90
    %s107 = sphi 0, %s91
  $region4: #{apply.1} parent=0 // loop_header_branch
    %12 = sbr.rel (%p10) target = $region8
  $region5: #{apply.1} parent=0 // loop_body
    %s14 = ssub.s32 %s9, 1
    %s15 = ssub.s32 %s9, 2
    %s16 = sadd.s32 %s9, 1
    %s17 = ssub.s32 %s9, %s16
    %p18 = scmp.eq.s32.totalorder %s17, 0
    %s20 = sadd.s32 %s19, 1
    %s21 = scalar_select %p18, %s19, %s20
    %p24 = pneg %p18
    %p25 = scmp.eq.s32.totalorder %s9, 1
    %p26 = por %p24, %p25
    %p27 = scmp.ne.s32.totalorder %s19, %s22
    %p28 = scmp.eq.s32.totalorder %s9, 0
    %p29 = por %p27, %p28
    %p30 = scmp.ne.s32.totalorder %s19, %s22
    %p31 = scmp.eq.s32.totalorder %s14, 1
    %p32 = por %p30, %p31
    %p33 = scmp.ne.s32.totalorder %s22, %s23
    %p34 = scmp.eq.s32.totalorder %s14, 0
    %p35 = por %p33, %p34
    %p36 = scmp.ne.s32.totalorder %s22, %s23
    %p37 = scmp.eq.s32.totalorder %s15, 1
    %p38 = por %p36, %p37
    %p40 = scmp.ne.s32.totalorder %s23, %s39
    %p41 = scmp.eq.s32.totalorder %s15, 0
    %p42 = por %p40, %p41
    %s44 = sadd.s32 %s43, 1
    %p47 = scmp.eq.s32.totalorder %s9, 1
    %p48 = scmp.ne.s32.totalorder %s43, %s45
    %p49 = scmp.eq.s32.totalorder %s9, 0
    %p50 = por %p48, %p49
    %p51 = scmp.ne.s32.totalorder %s43, %s45
    %p52 = scmp.eq.s32.totalorder %s14, 1
    %p53 = por %p51, %p52
    %p54 = scmp.ne.s32.totalorder %s45, %s46
    %p55 = scmp.eq.s32.totalorder %s14, 0
    %p56 = por %p54, %p55
    %p57 = scmp.ne.s32.totalorder %s45, %s46
    %p58 = scmp.eq.s32.totalorder %s15, 1
    %p59 = por %p57, %p58
    %p61 = scmp.ne.s32.totalorder %s46, %s60
    %p62 = scmp.eq.s32.totalorder %s15, 0
    %p63 = por %p61, %p62
    %s65 = sadd.s32 %s64, 1
    %p68 = scmp.eq.s32.totalorder %s9, 1
    %p69 = scmp.ne.s32.totalorder %s64, %s66
    %p70 = scmp.eq.s32.totalorder %s9, 0
    %p71 = por %p69, %p70
    %p72 = scmp.ne.s32.totalorder %s64, %s66
    %p73 = scmp.eq.s32.totalorder %s14, 1
    %p74 = por %p72, %p73
    %p75 = scmp.ne.s32.totalorder %s66, %s67
    %p76 = scmp.eq.s32.totalorder %s14, 0
    %p77 = por %p75, %p76
    %p78 = scmp.ne.s32.totalorder %s66, %s67
    %p79 = scmp.eq.s32.totalorder %s15, 1
    %p80 = por %p78, %p79
    %p82 = scmp.ne.s32.totalorder %s67, %s81
    %p83 = scmp.eq.s32.totalorder %s15, 0
    %p84 = por %p82, %p83
    %s85 = ssub.s32 %s9, %s16
    %p86 = scmp.eq.s32.totalorder %s85, 0
    %s88 = sadd.s32 %s87, 1
    %s89 = scalar_select %p86, %s87, %s88
    %p92 = pneg %p86
    %p93 = scmp.eq.s32.totalorder %s9, 1
    %p94 = por %p92, %p93
    %p95 = scmp.ne.s32.totalorder %s87, %s90
    %p96 = scmp.eq.s32.totalorder %s9, 0
    %p97 = por %p95, %p96
    %p98 = scmp.ne.s32.totalorder %s87, %s90
    %p99 = scmp.eq.s32.totalorder %s14, 1
    %p100 = por %p98, %p99
    %p101 = scmp.ne.s32.totalorder %s90, %s91
    %p102 = scmp.eq.s32.totalorder %s14, 0
    %p103 = por %p101, %p102
    %p104 = scmp.ne.s32.totalorder %s90, %s91
    %p105 = scmp.eq.s32.totalorder %s15, 1
    %p106 = por %p104, %p105
    %p108 = scmp.ne.s32.totalorder %s91, %s107
    %p109 = scmp.eq.s32.totalorder %s15, 0
    %p110 = por %p108, %p109
    %p111 = scmp.le.s32.totalorder 1, %s9
    %p112 = scmp.lt.s32.totalorder %s9, 3
    %p113 = pnand %p111, %p112
    %p114 = pneg %p113
    // Predicated region
    $region9: #{apply.1} parent=5 // pred_check
      _
    $region10: #{apply.1} parent=5 // pred_check_branch
      %116 = sbr.rel (%p113) target = $region12
    $region11: #{apply.1} parent=5 // pred_region
      %s117 = ssub.s32 %s9, 1
      // Predicated region
      $region13: #{apply.1} parent=11 // pred_check
        %p118 = pneg %p56
      $region14: #{apply.1} parent=11 // pred_check_branch
        %120 = sbr.rel (%p118) target = $region16
      $region15: #{apply.1} parent=11 // pred_region
        _
      $region16: #{apply.1} parent=11 // pred_fallthru
        _
      // Predicated region
      $region17: #{apply.1} parent=11 // pred_check
        %p121 = pneg %p77
      $region18: #{apply.1} parent=11 // pred_check_branch
        %123 = sbr.rel (%p121) target = $region20
      $region19: #{apply.1} parent=11 // pred_region
        _
      $region20: #{apply.1} parent=11 // pred_fallthru
        _
    $region12: #{apply.1} parent=5 // pred_fallthru
      _
    %p124 = scmp.lt.s32.totalorder %s9, 2
    // Predicated region
    $region21: #{apply.1} parent=5 // pred_check
      %p125 = pneg %p124
    $region22: #{apply.1} parent=5 // pred_check_branch
      %127 = sbr.rel (%p125) target = $region24
    $region23: #{apply.1} parent=5 // pred_region
      // Predicated region
      $region25: #{apply.1} parent=23 // pred_check
        %p128 = pneg %p29
      $region26: #{apply.1} parent=23 // pred_check_branch
        %130 = sbr.rel (%p128) target = $region28
      $region27: #{apply.1} parent=23 // pred_region
        %s131 = smul.u32 4, %s9
        %p132 = scmp.lt.s32.totalorder %s131, 7
        %s133 = scalar_select %p132, %s131, 7
        %s134 = smul.addr %s133, 8
        %s135 = scalar_lea.vmem %s0, %s134
        %s136 = smul.u32 4, %s9
      $region28: #{apply.1} parent=23 // pred_fallthru
        _
    $region24: #{apply.1} parent=5 // pred_fallthru
      _
    %p137 = scmp.le.s32.totalorder 1, %s9
    %p138 = scmp.lt.s32.totalorder %s9, 3
    %p139 = pnand %p137, %p138
    %p140 = pneg %p139
    // Predicated region
    $region29: #{apply.1} parent=5 // pred_check
      _
    $region30: #{apply.1} parent=5 // pred_check_branch
      %142 = sbr.rel (%p139) target = $region32
    $region31: #{apply.1} parent=5 // pred_region
      %s143 = ssub.s32 %s9, 1
      %s144 = smul.u32 4, %s14
      %p145 = scmp.lt.s32.totalorder %s144, 7
      %s146 = scalar_select %p145, %s144, 7
      %s147 = smul.addr %s146, 8
      %s148 = scalar_lea.vmem %s0, %s147
      %p149 = pneg %p35
      %p150 = pneg %p32
      %p151 = pneg %p56
      %p152 = pneg %p53
      %p153 = pneg %p77
      %p154 = pneg %p74
      %p155 = pneg %p103
      %p156 = pneg %p100
      %s157 = smul.u32 4, %s14
      %p158 = scmp.lt.s32.totalorder %s157, 7
      %s159 = scalar_select %p158, %s157, 7
      %s160 = smul.addr %s159, 8
      %s161 = scalar_lea.vmem %s3, %s160
      %s162 = smul.u32 4, %s14
      %p163 = scmp.lt.s32.totalorder %s162, 7
      %s164 = scalar_select %p163, %s162, 7
      %s165 = smul.addr %s164, 8
      %s166 = scalar_lea.vmem %s0, %s165
      %s167 = smul.u32 4, %s14
      %s168 = smul.u32 4, %s14
      %p169 = scmp.lt.s32.totalorder %s168, 7
      %s170 = scalar_select %p169, %s168, 7
      %s171 = smul.addr %s170, 8
      %s172 = scalar_lea.vmem %s3, %s171
      %s173 = smul.u32 4, %s14
      %v174 = vld [vmem:[%s166] sm:$0xff]
      %v175 = vld [vmem:[%s166 + $0x8] sm:$0xff]
      %v176 = vld [vmem:[%s166 + $0x10] sm:$0xff]
      %v177 = vld [vmem:[%s166 + $0x18] sm:$0xff]
      %v178 = vld [vmem:[%s1] sm:$0xff]
      %v179 = vld [vmem:[%s1 + $0x8] sm:$0xff]
      %v180 = vld [vmem:[%s1 + $0x10] sm:$0xff]
      %v181 = vld [vmem:[%s1 + $0x18] sm:$0xff]
      %v182 = vld [vmem:[%s2] sm:$0x1]
      %v184 = vlaneseq
      %v185 = vshrl.u32 %v184, 7
      %v186 = vsub.s32 0, %v185
      %v187 = vrot.slane %v182, %v186
      %vm189 = vcmask 261120
      %v191 = vsel %vm189, %v174, 0
      %v194 = vsel %vm189, %v175, 0
      %v197 = vsel %vm189, %v176, 0
      %v200 = vsel %vm189, %v177, 0
      %202 = vmatprep.subr.mxu0 0.0
      %203 = vmatpush1.msra.mxu0 0.0
      %204 = vmatprep.subr.mxu0 0.0
      %205 = vmatpush1.msra.mxu0 0.0
      %206 = vmatprep.subr.mxu0 0.0
      %207 = vmatpush1.msra.mxu0 0.0
      %208 = vmatprep.subr.mxu0 0.0
      %209 = vmatpush1.msra.mxu0 0.0
      %210 = vmatprep.subr.mxu0 0.0
      %211 = vmatpush1.msra.mxu0 0.0
      %212 = vmatprep.subr.mxu0 0.0
      %213 = vmatpush1.msra.mxu0 0.0
      %214 = vmatprep.subr.mxu0 0.0
      %215 = vmatpush1.msra.mxu0 0.0
      %216 = vmatprep.subr.mxu0 0.0
      %217 = vmatpush1.msra.mxu0 0.0
      %218 = vmatprep.subr.mxu0 0.0
      %219 = vmatpush1.msra.mxu0 0.0
      %220 = vmatprep.subr.mxu0 0.0
      %221 = vmatpush1.msra.mxu0 0.0
      %222 = vmatprep.subr.mxu0 0.0
      %223 = vmatpush1.msra.mxu0 0.0
      %224 = vmatprep.subr.mxu0 0.0
      %225 = vmatpush1.msra.mxu0 0.0
      %226 = vmatprep.subr.mxu0 0.0
      %227 = vmatpush1.msra.mxu0 %v181
      %228 = vmatprep.subr.mxu0 0.0
      %229 = vmatpush1.msra.mxu0 %v180
      %230 = vmatprep.subr.mxu0 0.0
      %231 = vmatpush1.msra.mxu0 %v179
      %232 = vmatprep.subr.mxu0 0.0
      %233 = vmatpush1.msra.mxu0 %v178
      %234 = vmatprep.subr.mxu0 0.0
      %235 = vmatpush2.msra.mxu0 0.0
      %236 = vmatprep.subr.mxu0 0.0
      %237 = vmatpush2.msra.mxu0 0.0
      %238 = vmatprep.subr.mxu0 0.0
      %239 = vmatpush2.msra.mxu0 0.0
      %240 = vmatprep.subr.mxu0 0.0
      %241 = vmatpush2.msra.mxu0 0.0
      %242 = vmatprep.subr.mxu0 0.0
      %243 = vmatpush2.msra.mxu0 0.0
      %244 = vmatprep.subr.mxu0 0.0
      %245 = vmatpush2.msra.mxu0 0.0
      %246 = vmatprep.subr.mxu0 0.0
      %247 = vmatpush2.msra.mxu0 0.0
      %248 = vmatprep.subr.mxu0 0.0
      %249 = vmatpush2.msra.mxu0 0.0
      %250 = vmatprep.subr.mxu0 0.0
      %251 = vmatpush2.msra.mxu0 0.0
      %252 = vmatprep.subr.mxu0 0.0
      %253 = vmatpush2.msra.mxu0 0.0
      %254 = vmatprep.subr.mxu0 0.0
      %255 = vmatpush2.msra.mxu0 0.0
      %256 = vmatprep.subr.mxu0 0.0
      %257 = vmatpush2.msra.mxu0 0.0
      %258 = vmatprep.subr.mxu0 0.0
      %259 = vmatpush2.msra.mxu0 0.0
      %260 = vmatprep.subr.mxu0 0.0
      %261 = vmatpush2.msra.mxu0 0.0
      %262 = vmatprep.subr.mxu0 0.0
      %263 = vmatpush2.msra.mxu0 0.0
      %264 = vmatprep.subr.mxu0 0.0
      %265 = vmatpush2.msra.mxu0 0.0
      %266 = vmatprep.mubr.f32.mxu0 0.0
      %267 = vmatmul.mubr.f32.gmra.mxu0 %v191
      %v268 = vpop.f32.mrf.mxu0
      %v269 = vadd.f32 %v187, %v268
      %v270 = vpop.f32.mrf.mxu0
      %271 = vmatprep.mubr.f32.mxu0 0.0
      %272 = vmatmul.mubr.f32.gmra.mxu0 %v194
      %v273 = vpop.f32.mrf.mxu0
      %v274 = vadd.f32 %v187, %v273
      %v275 = vpop.f32.mrf.mxu0
      %276 = vmatprep.mubr.f32.mxu0 0.0
      %277 = vmatmul.mubr.f32.gmra.mxu0 %v197
      %v278 = vpop.f32.mrf.mxu0
      %v279 = vadd.f32 %v187, %v278
      %v280 = vpop.f32.mrf.mxu0
      %281 = vmatprep.mubr.f32.mxu0 0.0
      %282 = vmatmul.mubr.f32.gmra.mxu0 %v200
      %v283 = vpop.f32.mrf.mxu0
      %v284 = vadd.f32 %v187, %v283
      %v285 = vpop.f32.mrf.mxu0
      %286 = vdwg.mxu0
      %287 = vst.msk [vmem:[%s172] sm:$0xff] %vm189, %v269
      %288 = vst.msk [vmem:[%s172 + $0x8] sm:$0xff] %vm189, %v274
      %289 = vst.msk [vmem:[%s172 + $0x10] sm:$0xff] %vm189, %v279
      %290 = vst.msk [vmem:[%s172 + $0x18] sm:$0xff] %vm189, %v284
      %s291 = smul.u32 4, %s14
      %p292 = scmp.lt.s32.totalorder %s291, 7
      %s293 = scalar_select %p292, %s291, 7
      %s294 = smul.addr %s293, 8
      %s295 = scalar_lea.vmem %s3, %s294
      // Predicated region
      $region33: #{apply.1} parent=31 // pred_check
        %p296 = pneg %p100
      $region34: #{apply.1} parent=31 // pred_check_branch
        %298 = sbr.rel (%p296) target = $region36
      $region35: #{apply.1} parent=31 // pred_region
        %s299 = smul.u32 4, %s14
      $region36: #{apply.1} parent=31 // pred_fallthru
        _
    $region32: #{apply.1} parent=5 // pred_fallthru
      _
    %p300 = scmp.le.s32.totalorder 2, %s9
    // Predicated region
    $region37: #{apply.1} parent=5 // pred_check
      %p301 = pneg %p300
    $region38: #{apply.1} parent=5 // pred_check_branch
      %303 = sbr.rel (%p301) target = $region40
    $region39: #{apply.1} parent=5 // pred_region
      %s304 = ssub.s32 %s9, 2
      // Predicated region
      $region41: #{apply.1} parent=39 // pred_check
        %p305 = pneg %p106
      $region42: #{apply.1} parent=39 // pred_check_branch
        %307 = sbr.rel (%p305) target = $region44
      $region43: #{apply.1} parent=39 // pred_region
        %s308 = smul.u32 4, %s15
        %p309 = scmp.lt.s32.totalorder %s308, 7
        %s310 = scalar_select %p309, %s308, 7
        %s311 = smul.addr %s310, 8
        %s312 = scalar_lea.vmem %s3, %s311
      $region44: #{apply.1} parent=39 // pred_fallthru
        _
    $region40: #{apply.1} parent=5 // pred_fallthru
      _
  $region6: #{apply.1} parent=0 // loop_footer
    %s13 = sadd.s32 1, %s9
  $region7: #{apply.1} parent=0 // loop_footer_branch
    %8 = sbr.rel target = $region3
  $region8: #{apply.1} parent=0 // loop_exit
    _

</llo_original>
